<compile_context>
chip_gen: v5e
topology: v5e:2x2
jax: 0.10.0
libtpu: 0.0.40
codegen_flags: <defaults>
</compile_context>

<pallas_src>
import functools

import jax
import jax.numpy as jnp
from jax import lax
from jax.experimental import pallas as pl
from jax.experimental.pallas import tpu as pltpu


def _round_up(x, m):
    return (x + m - 1) // m * m


def _l2_normalize(x, axis=1):
    """x / max(||x||, 1e-12) == x * rsqrt(max(||x||^2, 1e-24)) in f32."""
    x32 = x.astype(jnp.float32)
    nrm2 = jnp.sum(x32 * x32, axis=axis, keepdims=True)
    return x32 * lax.rsqrt(jnp.maximum(nrm2, jnp.float32(1e-24)))


def _infonce_kernel(z1_ref, z2_ref, idx_ref, out_ref, *, temperature, use_gather):
    i = pl.program_id(0)

    z1_raw = z1_ref[...]                          # [TB, D]
    idx = idx_ref[...]                            # [TB, K] int32

    tb, _ = z1_raw.shape
    b = z2_ref.shape[0]
    k = idx.shape[1]

    # Normalize only the query tile (z2 was pre-normalized in the wrapper).
    z1f = z1_raw.astype(jnp.float32)
    z1n = z1f * lax.rsqrt(
        jnp.maximum(jnp.sum(z1f * z1f, axis=1, keepdims=True), jnp.float32(1e-24)))

    # bf16 inputs feed the MXU as bf16 (f32 accumulate); f32 stays f32.
    z1m = z1n.astype(jnp.bfloat16) if z1_raw.dtype == jnp.bfloat16 else z1n

    # Positive logit from the aligned diagonal slice of resident z2n (no gather).
    start = pl.multiple_of(i * tb, tb)
    z2_pos = z2_ref[pl.ds(start, tb), :].astype(jnp.float32)      # [TB, D]
    pos = jnp.sum(z1n * z2_pos, axis=1, keepdims=True)            # [TB, 1]

    # All-pairs similarity for this query tile: [TB, B] on the MXU, f32 acc.
    # Contracting dim 1 of both operands (A @ B.T pattern, no explicit .T).
    # TODO(synk): confirm via pl.lower_as_mlir that no per-tile relayout of
    # the resident [B, D] operand is emitted; if so, pass z2n as [D, B].
    sim = lax.dot_general(
        z1m, z2_ref[...], (((1,), (1,)), ((), ())),
        preferred_element_type=jnp.float32,
    )

    idx_c = jnp.clip(idx, 0, b - 1)               # also covers padded rows
    if use_gather:
        # Single lane gather of the K negative columns.
        # TODO(synk): verify take_along_axis (tpu.dynamic_gather) lowering for
        # very large B on the target Mosaic via pl.lower_as_mlir.
        neg = jnp.take_along_axis(sim, idx_c, axis=1, mode="promise_in_bounds")
    else:
        # Small-shape path (chosen statically in the wrapper only when
        # TB*K*B is tiny): one-hot select, guaranteed lowering, bounded VMEM.
        col = lax.broadcasted_iota(jnp.int32, (tb, k, b), 2)
        hit = idx_c[:, :, None] == col
        neg = jnp.sum(jnp.where(hit, sim[:, None, :], 0.0), axis=2)   # [TB, K]

    # Temperature on the [TB, K+1] logits only (not on the full [TB, B] sim).
    inv_t = jnp.float32(1.0 / temperature)
    pos = pos * inv_t
    neg = neg * inv_t

    # Cross entropy vs. label 0 (the positive), max-stabilized, no concat.
    m = jnp.maximum(pos, jnp.max(neg, axis=1, keepdims=True))
    denom = jnp.exp(pos - m) + jnp.sum(jnp.exp(neg - m), axis=1, keepdims=True)
    lse = m + jnp.log(denom)
    loss_rows = (lse - pos)[:, 0]                                 # [TB]

    out_ref[...] = loss_rows.reshape(1, tb).astype(out_ref.dtype)


def _vmem_cap_bytes():
    try:
        cap = int(pltpu.get_tpu_info().vmem_capacity_bytes)
    except Exception:
        cap = 64 * 2 ** 20          # conservative: v7x per-TensorCore VMEM
    return int(cap * 0.85)


def _vmem_estimate(B, D, K, TB, itemsize):
    b_pad = _round_up(B, TB)
    onehot = TB * K * b_pad * 4
    onehot = 2 * onehot if onehot <= (4 * 2 ** 20) else 0   # gated path only
    return (b_pad * D * itemsize                 # z2n resident (single copy)
            + 2 * TB * D * itemsize              # z1 tile, double-buffered
            + 2 * TB * K * 4                     # idx tile, double-buffered
            + 2 * TB * 4                         # output tile
            + (2 * TB * D + TB * b_pad + 8 * TB * max(K, 8)) * 4  # f32 temps
            + onehot)


def _pick_tile(B, D, K, itemsize, vmem_cap):
    if B <= 128:
        return _round_up(max(B, 8), 8)
    tb = 128
    try:
        kind = jax.devices()[0].device_kind.lower()
    except Exception:
        kind = ""
    if B >= 256 and "v5" not in kind:
        tb = 256        # 256-wide MXU on v6e/v7x: halve grid steps
    # Re-check the VMEM budget (decisive on v7x's 64 MiB/TC).
    while tb > 128 and _vmem_estimate(B, D, K, tb, itemsize) > vmem_cap:
        tb //= 2
    return tb
    # TODO(synk): for B*D so large that even TB=128 + resident z2n overflows
    # VMEM, add a column-blocked grid axis with an online-softmax carry.


def _build_call(B_pad, D, K, TB, n_tiles, dtype, temperature, use_gather, vmem_limit):
    kernel = functools.partial(
        _infonce_kernel, temperature=float(temperature), use_gather=use_gather)
    itemsize = jnp.dtype(dtype).itemsize

    cost = pl.CostEstimate(
        flops=2 * B_pad * B_pad * D + 6 * B_pad * D,
        transcendentals=B_pad * (K + 3),
        bytes_accessed=2 * B_pad * D * itemsize + B_pad * K * 4 + n_tiles * TB * 4,
    )

    return pl.pallas_call(
        kernel,
        out_shape=jax.ShapeDtypeStruct((n_tiles, TB), jnp.float32),
        grid=(n_tiles,),
        in_specs=[
            pl.BlockSpec((TB, D), lambda i: (i, 0)),               # z1 query tile
            pl.BlockSpec(memory_space=pltpu.MemorySpace.VMEM),     # z2n resident, single copy
            pl.BlockSpec((TB, K), lambda i: (i, 0)),               # negative indices
        ],
        out_specs=pl.BlockSpec((1, TB), lambda i: (i, 0)),         # lane-dense loss slab
        compiler_params=pltpu.CompilerParams(
            dimension_semantics=("parallel",),                     # shard tiles across TCs
            vmem_limit_bytes=int(vmem_limit),
        ),
        cost_estimate=cost,
    )


def infonce_loss(z1, z2, negative_samples, temperature=0.07):
    """Pallas TPU InfoNCE loss. z1, z2: [B, D] float; negative_samples: [B, K] int."""
    B, D = z1.shape
    K = negative_samples.shape[1]
    dtype = z1.dtype
    itemsize = jnp.dtype(dtype).itemsize

    vmem_cap = _vmem_cap_bytes()
    TB = _pick_tile(B, D, K, itemsize, vmem_cap)
    B_pad = _round_up(B, TB)
    n_tiles = B_pad // TB

    # Pre-normalize z2 once in the wrapper (one-time layout/plumbing op),
    # back in the input dtype so bf16 inputs feed the MXU as bf16.
    z2n = _l2_normalize(z2).astype(dtype)
    idx = negative_samples.astype(jnp.int32)

    if B_pad != B:
        pad = B_pad - B
        z1 = jnp.pad(z1, ((0, pad), (0, 0)))
        z2n = jnp.pad(z2n, ((0, pad), (0, 0)))
        idx = jnp.pad(idx, ((0, pad), (0, 0)))

    # Static (shape-based) gather-path choice — no try/except (unreachable
    # under jit): tiny problems take the guaranteed one-hot select, larger
    # ones take the single lane gather.
    use_gather = (TB * K * B_pad * 4) > (4 * 2 ** 20)

    est = _vmem_estimate(B_pad, D, K, TB, itemsize)
    vmem_limit = min(vmem_cap, max(int(1.5 * est), 16 * 2 ** 20))

    call = _build_call(B_pad, D, K, TB, n_tiles, dtype, temperature,
                       use_gather, vmem_limit)
    per_row = call(z1, z2n, idx)

    # Padded rows sit at the tail; drop them before the mean (done in the wrapper).
    return jnp.mean(per_row.reshape(-1)[:B])


def _infonce_ref(z1, z2, negative_samples, temperature=0.07):
    """Pure-JAX reference mirroring the PyTorch forward."""
    eps = 1e-12
    z1n = z1 / jnp.maximum(jnp.linalg.norm(z1, axis=1, keepdims=True), eps)
    z2n = z2 / jnp.maximum(jnp.linalg.norm(z2, axis=1, keepdims=True), eps)
    pos = jnp.sum(z1n * z2n, axis=1) / temperature                       # [B]
    neg_emb = z2n[negative_samples]                                      # [B, K, D]
    neg = jnp.sum(z1n[:, None, :] * neg_emb, axis=2) / temperature       # [B, K]
    logits = jnp.concatenate([pos[:, None], neg], axis=1)                # [B, K+1]
    lse = jax.scipy.special.logsumexp(logits, axis=1)
    return jnp.mean(lse - logits[:, 0])


if __name__ == "__main__":
    key = jax.random.PRNGKey(0)
    k1, k2, k3 = jax.random.split(key, 3)

    B, D, K = 8, 32, 4  # small shapes consistent with the module's forward
    z1 = jax.random.normal(k1, (B, D), dtype=jnp.float32)
    z2 = jax.random.normal(k2, (B, D), dtype=jnp.float32)
    negative_samples = jax.random.randint(k3, (B, K), 0, B, dtype=jnp.int32)

    loss = infonce_loss(z1, z2, negative_samples, temperature=0.07)
    loss = jax.block_until_ready(loss)

    ref = _infonce_ref(z1, z2, negative_samples, temperature=0.07)
    assert jnp.allclose(loss, ref, atol=1e-4, rtol=1e-4), (loss, ref)

    print("KERNEL_OK")
</pallas_src>

<mosaic_0001>
module attributes {stable_mosaic.version = 11 : i64} {
  func.func @_infonce_kernel(%arg0: i32, %arg1: memref<8x32xf32, #tpu.memory_space<vmem>>, %arg2: memref<8x32xf32, #tpu.memory_space<vmem>>, %arg3: memref<8x4xi32, #tpu.memory_space<vmem>>, %arg4: memref<1x8xf32, #tpu.memory_space<vmem>>) attributes {dimension_semantics = [#tpu.dimension_semantics<parallel>], iteration_bounds = array<i64: 1>, scalar_prefetch = 0 : i64, scratch_operands = 0 : i64, tpu.core_type = #tpu.core_type<tc>, window_params = [{transform_indices = @transform_0, window_bounds = array<i64: 8, 32>}, {pipeline_mode = #tpu.pipeline_mode<synchronous>, transform_indices = @transform_1, window_bounds = array<i64: 8, 32>}, {transform_indices = @transform_2, window_bounds = array<i64: 8, 4>}, {transform_indices = @transform_3, window_bounds = array<i64: 1, 8>}]} {
    %c0 = arith.constant 0 : index
    %c0_0 = arith.constant 0 : index
    %0 = vector.load %arg1[%c0, %c0_0] : memref<8x32xf32, #tpu.memory_space<vmem>>, vector<8x32xf32>
    %c0_1 = arith.constant 0 : index
    %c0_2 = arith.constant 0 : index
    %1 = vector.load %arg3[%c0_1, %c0_2] : memref<8x4xi32, #tpu.memory_space<vmem>>, vector<8x4xi32>
    %2 = arith.mulf %0, %0 : vector<8x32xf32>
    %cst = arith.constant dense<0.000000e+00> : vector<8xf32>
    %3 = vector.multi_reduction <add>, %2, %cst [1] : vector<8x32xf32> to vector<8xf32>
    %4 = vector.shape_cast %3 : vector<8xf32> to vector<8x1xf32>
    %cst_3 = arith.constant 1.000000e-24 : f32
    %5 = vector.broadcast %cst_3 : f32 to vector<8x1xf32>
    %6 = arith.maximumf %4, %5 : vector<8x1xf32>
    %7 = math.rsqrt %6 : vector<8x1xf32>
    %8 = vector.broadcast %7 : vector<8x1xf32> to vector<8x32xf32>
    %9 = arith.mulf %0, %8 : vector<8x32xf32>
    %c8_i32 = arith.constant 8 : i32
    %10 = arith.muli %arg0, %c8_i32 : i32
    %11 = tpu.assume_multiple %10, 8 : i32
    %12 = arith.index_cast %11 : i32 to index
    %c0_4 = arith.constant 0 : index
    %13 = vector.load %arg2[%12, %c0_4] : memref<8x32xf32, #tpu.memory_space<vmem>>, vector<8x32xf32>
    %14 = arith.mulf %9, %13 : vector<8x32xf32>
    %cst_5 = arith.constant dense<0.000000e+00> : vector<8xf32>
    %15 = vector.multi_reduction <add>, %14, %cst_5 [1] : vector<8x32xf32> to vector<8xf32>
    %16 = vector.shape_cast %15 : vector<8xf32> to vector<8x1xf32>
    %c0_6 = arith.constant 0 : index
    %c0_7 = arith.constant 0 : index
    %17 = vector.load %arg2[%c0_6, %c0_7] : memref<8x32xf32, #tpu.memory_space<vmem>>, vector<8x32xf32>
    %cst_8 = arith.constant dense<0.000000e+00> : vector<8x8xf32>
    %18 = tpu.matmul %9, %17, %cst_8 {dimension_numbers = #tpu.dot_dimension_numbers<[1], [1], [0], [0], [0, 0, 1, 0], [], []>} : vector<8x32xf32>, vector<8x32xf32>, vector<8x8xf32> -> vector<8x8xf32>
    %c0_i32 = arith.constant 0 : i32
    %c7_i32 = arith.constant 7 : i32
    %19 = vector.broadcast %c0_i32 : i32 to vector<8x4xi32>
    %20 = arith.maxsi %19, %1 : vector<8x4xi32>
    %21 = vector.broadcast %c7_i32 : i32 to vector<8x4xi32>
    %22 = arith.minsi %21, %20 : vector<8x4xi32>
    %23 = tpu.iota {dimensions = array<i32: 2>} : vector<8x4x8xi32>
    %24 = vector.shape_cast %22 : vector<8x4xi32> to vector<8x4x1xi32>
    %25 = vector.broadcast %24 : vector<8x4x1xi32> to vector<8x4x8xi32>
    %26 = arith.cmpi eq, %25, %23 : vector<8x4x8xi32>
    %27 = vector.shape_cast %18 : vector<8x8xf32> to vector<8x1x8xf32>
    %cst_9 = arith.constant 0.000000e+00 : f32
    %28 = vector.shape_cast %27 : vector<8x1x8xf32> to vector<8x1x8xf32>
    %29 = vector.broadcast %28 : vector<8x1x8xf32> to vector<8x4x8xf32>
    %30 = vector.broadcast %cst_9 : f32 to vector<8x4x8xf32>
    %31 = arith.select %26, %29, %30 : vector<8x4x8xi1>, vector<8x4x8xf32>
    %cst_10 = arith.constant dense<0.000000e+00> : vector<8x4xf32>
    %32 = vector.multi_reduction <add>, %31, %cst_10 [2] : vector<8x4x8xf32> to vector<8x4xf32>
    %cst_11 = arith.constant 14.2857141 : f32
    %33 = vector.broadcast %cst_11 : f32 to vector<8x1xf32>
    %34 = arith.mulf %16, %33 : vector<8x1xf32>
    %cst_12 = arith.constant 14.2857141 : f32
    %35 = vector.broadcast %cst_12 : f32 to vector<8x4xf32>
    %36 = arith.mulf %32, %35 : vector<8x4xf32>
    %cst_13 = arith.constant dense<0xFF800000> : vector<8xf32>
    %37 = vector.multi_reduction <maximumf>, %36, %cst_13 [1] : vector<8x4xf32> to vector<8xf32>
    %38 = vector.shape_cast %37 : vector<8xf32> to vector<8x1xf32>
    %39 = arith.maximumf %34, %38 : vector<8x1xf32>
    %40 = arith.subf %34, %39 : vector<8x1xf32>
    %41 = math.exp %40 : vector<8x1xf32>
    %42 = vector.broadcast %39 : vector<8x1xf32> to vector<8x4xf32>
    %43 = arith.subf %36, %42 : vector<8x4xf32>
    %44 = math.exp %43 : vector<8x4xf32>
    %cst_14 = arith.constant dense<0.000000e+00> : vector<8xf32>
    %45 = vector.multi_reduction <add>, %44, %cst_14 [1] : vector<8x4xf32> to vector<8xf32>
    %46 = vector.shape_cast %45 : vector<8xf32> to vector<8x1xf32>
    %47 = arith.addf %41, %46 : vector<8x1xf32>
    %48 = math.log %47 : vector<8x1xf32>
    %49 = arith.addf %39, %48 : vector<8x1xf32>
    %50 = arith.subf %49, %34 : vector<8x1xf32>
    %51 = vector.shape_cast %50 : vector<8x1xf32> to vector<8xf32>
    %52 = vector.shape_cast %51 : vector<8xf32> to vector<1x8xf32>
    %c0_15 = arith.constant 0 : index
    %c0_16 = arith.constant 0 : index
    %53 = vector.load %arg4[%c0_15, %c0_16] : memref<1x8xf32, #tpu.memory_space<vmem>>, vector<1x8xf32>
    tpu.vector_store %arg4[%c0_15, %c0_16], %52 {strides = array<i32>} : memref<1x8xf32, #tpu.memory_space<vmem>>, vector<1x8xf32>,
    return
  }
  func.func @transform_0(%arg0: i32) -> (i32, i32) {
    %c0_i32 = arith.constant 0 : i32
    %c0_i32_0 = arith.constant 0 : i32
    return %arg0, %c0_i32 : i32, i32
  }
  func.func @transform_1(%arg0: i32) -> (i32, i32) {
    %c0_i32 = arith.constant 0 : i32
    %c0_i32_0 = arith.constant 0 : i32
    %c0_i32_1 = arith.constant 0 : i32
    return %c0_i32, %c0_i32_0 : i32, i32
  }
  func.func @transform_2(%arg0: i32) -> (i32, i32) {
    %c0_i32 = arith.constant 0 : i32
    %c0_i32_0 = arith.constant 0 : i32
    return %arg0, %c0_i32 : i32, i32
  }
  func.func @transform_3(%arg0: i32) -> (i32, i32) {
    %c0_i32 = arith.constant 0 : i32
    %c0_i32_0 = arith.constant 0 : i32
    return %arg0, %c0_i32 : i32, i32
  }
}

</mosaic_0001>

<llo_original>
// kernel: tpu_custom_call.1
$region0: #{tpu_custom_call.1}
  #allocation0 [shape = 'u32[]', space=smem, size = 0x4, offset = 0x4, fixed_abs, tag = 'smem constant byte address 0x4 - core index']
  #allocation1 [shape = 'u32[72,128]{1,0:T(1,128)}', space=vmem, size = 0x9000, scoped, tag = 'internal scratch']
  %s0 = inlined_call_operand.vmem [shape: f32[8,32], index: 0, kind: input, shape index: {}]
  %s1 = inlined_call_operand.hbm [shape: f32[8,32], index: 1, kind: input, shape index: {}]
  %s2 = inlined_call_operand.vmem [shape: s32[8,4], index: 2, kind: input, shape index: {}]
  %s3 = inlined_call_operand.hbm [shape: f32[1,8], index: 3, kind: output, shape index: {}]
  %s4 = sld [smem:[#allocation0]]
  $region26: #{tpu_custom_call.1} parent=0
    _
  %s6 = ssub.s32 1, %s4
  %s7 = scalar_select 0, %s6, %s4
  $region1: #{tpu_custom_call.1} parent=0
    #allocation2 [shape = 'u8[4096]{0}', space=vmem, size = 0x1000, scoped, tag = 'input window, operand 1, single buffered']
    #allocation3 [shape = 's32[1]{0}', space=sflag, size = 0x4, scoped, tag = 'scoped memory for tpu_custom_call.1']
    #allocation4 [shape = 's32[1]{0}', space=sflag, size = 0x4, scoped, tag = 'scoped memory for tpu_custom_call.1']
    #allocation5 [shape = 'u8[512]{0}', space=vmem, size = 0x400, scoped, tag = 'output window, operand 0, single buffered']
    %8 = vsyncpa [#allocation3], 0
    %9 = vsyncpa [#allocation4], 0
    // Predicated region
    $region2: #{tpu_custom_call.1} parent=1 // pred_check
      _
    $region3: #{tpu_custom_call.1} parent=1 // pred_check_branch
      %11 = sbr.rel (0) target = $region5
    $region4: #{tpu_custom_call.1} parent=1 // pred_region
      _
    $region5: #{tpu_custom_call.1} parent=1 // pred_fallthru
      _
    // Predicated region
    $region6: #{tpu_custom_call.1} parent=1 // pred_check
      _
    $region7: #{tpu_custom_call.1} parent=1 // pred_check_branch
      %13 = sbr.rel (0) target = $region9
    $region8: #{tpu_custom_call.1} parent=1 // pred_region
      %15 = vsyncadd [#allocation3], 0
      %s17 = sshll.u32 %s1, 4
      %s18 = int_to_ptr.hbm [resolvable:$true] %s17
      %s19 = sshll.u32 [#allocation2], 4
      %s20 = int_to_ptr.vmem [resolvable:$true] %s19
      %22 = dma.hbm_to_vmem [thread:$0]  %s18, 128, %s20, [#allocation3]
    $region9: #{tpu_custom_call.1} parent=1 // pred_fallthru
      _
    // Predicated region
    $region10: #{tpu_custom_call.1} parent=1 // pred_check
      _
    $region11: #{tpu_custom_call.1} parent=1 // pred_check_branch
      %24 = sbr.rel (0) target = $region13
    $region12: #{tpu_custom_call.1} parent=1 // pred_region
      _
    $region13: #{tpu_custom_call.1} parent=1 // pred_fallthru
      _
    // Predicated region
    $region14: #{tpu_custom_call.1} parent=1 // pred_check
      _
    $region15: #{tpu_custom_call.1} parent=1 // pred_check_branch
      %26 = sbr.rel (0) target = $region17
    $region16: #{tpu_custom_call.1} parent=1 // pred_region
      %28 = dma.done [#allocation3], 128
    $region17: #{tpu_custom_call.1} parent=1 // pred_fallthru
      _
    %v29 = vld [vmem:[%s0] sm:$0xff]
    %v30 = vld [vmem:[%s2] sm:$0xff]
    %v31 = vmul.f32 %v29, %v29
    %vm32 = vcmask 261120
    %v33 = vsel %vm32, %v31, 0.0
    %34 = vadd.xlane.f32.xlu0 %v33
    %v35 = vpop.xlane.xlu0 %34
    %v36 = vmax.f32 %v35, 1e-24
    %v37 = vrsqrt.pop %v36
    %v38 = vmul.f32 %v37, %v36
    %v39 = vmul.f32 %v38, %v37
    %v40 = vmul.f32 0.5, %v39
    %v41 = vsub.f32 1.5, %v40
    %v42 = vmul.f32 %v37, %v41
    %vm43 = vweird.f32 %v36
    %vm44 = vweird.f32 %v37
    %vm45 = vmor %vm43, %vm44
    %v46 = vsel %vm45, %v37, %v42
    %v47 = vmul.f32 %v29, %v46
    %s48 = smul.u32 0, 8
    %s49 = scalar_lea.vmem [#allocation2], %s48
    %v50 = vld [vmem:[%s49] sm:$0xff]
    %v51 = vmul.f32 %v47, %v50
    %v52 = vsel %vm32, %v51, 0.0
    %53 = vadd.xlane.f32.xlu0 %v52
    %v54 = vpop.xlane.xlu0 %53
    %v55 = vld [vmem:[#allocation2] sm:$0xff]
    %v57 = vsel %vm32, %v47, 0
    %v60 = vsel %vm32, %v55, 0
    %62 = vmatpush.xpose.msra.mxu0 0.0
    %63 = vmatpush.xpose.msra.mxu0 0.0
    %64 = vmatpush.xpose.msra.mxu0 0.0
    %65 = vmatpush.xpose.msra.mxu0 0.0
    %66 = vmatpush.xpose.msra.mxu0 0.0
    %67 = vmatpush.xpose.msra.mxu0 0.0
    %68 = vmatpush.xpose.msra.mxu0 0.0
    %69 = vmatpush.xpose.msra.mxu0 0.0
    %70 = vmatpush.xpose.msra.mxu0 0.0
    %71 = vmatpush.xpose.msra.mxu0 0.0
    %72 = vmatpush.xpose.msra.mxu0 0.0
    %73 = vmatpush.xpose.msra.mxu0 0.0
    %74 = vmatpush.xpose.msra.mxu0 0.0
    %75 = vmatpush.xpose.msra.mxu0 0.0
    %76 = vmatpush.xpose.msra.mxu0 0.0
    %77 = vmatpush.xpose.msra.mxu0 %v60
    %78 = vmatmul.f32.gmra.mxu0 %v57
    %v79 = vpop.f32.mrf.mxu0
    %v80 = vadd.f32 0.0, %v79
    %81 = vdwg.mxu0
    %vm82 = vcmp.gt.s32.totalorder %v30, 0
    %v83 = vsel %vm82, %v30, 0
    %vm84 = vcmp.lt.s32.totalorder %v83, 7
    %v85 = vsel %vm84, %v83, 7
    %v86 = vlaneseq
    %v87 = vand.u32 %v86, 127
    %v88 = vperm.slane %v85, 0
    %v89 = vlaneseq
    %v90 = vshrl.u32 %v89, 7
    %92 = vset.pattern.permute.xlu0 %v90
    %93 = vperm.xlu0 %92, %v88
    %v94 = vpop.permute.xlu0 %93
    %v95 = vperm.slane %v85, 1
    %v96 = vlaneseq
    %v97 = vshrl.u32 %v96, 7
    %99 = vset.pattern.permute.xlu0 %v97
    %100 = vperm.xlu0 %99, %v95
    %v101 = vpop.permute.xlu0 %100
    %v102 = vperm.slane %v85, 2
    %v103 = vlaneseq
    %v104 = vshrl.u32 %v103, 7
    %106 = vset.pattern.permute.xlu0 %v104
    %107 = vperm.xlu0 %106, %v102
    %v108 = vpop.permute.xlu0 %107
    %v109 = vperm.slane %v85, 3
    %v110 = vlaneseq
    %v111 = vshrl.u32 %v110, 7
    %113 = vset.pattern.permute.xlu0 %v111
    %114 = vperm.xlu0 %113, %v109
    %v115 = vpop.permute.xlu0 %114
    %v116 = vperm.slane %v85, 4
    %v117 = vlaneseq
    %v118 = vshrl.u32 %v117, 7
    %120 = vset.pattern.permute.xlu0 %v118
    %121 = vperm.xlu0 %120, %v116
    %v122 = vpop.permute.xlu0 %121
    %v123 = vperm.slane %v85, 5
    %v124 = vlaneseq
    %v125 = vshrl.u32 %v124, 7
    %127 = vset.pattern.permute.xlu0 %v125
    %128 = vperm.xlu0 %127, %v123
    %v129 = vpop.permute.xlu0 %128
    %v130 = vperm.slane %v85, 6
    %v131 = vlaneseq
    %v132 = vshrl.u32 %v131, 7
    %134 = vset.pattern.permute.xlu0 %v132
    %135 = vperm.xlu0 %134, %v130
    %v136 = vpop.permute.xlu0 %135
    %v137 = vperm.slane %v85, 7
    %v138 = vlaneseq
    %v139 = vshrl.u32 %v138, 7
    %141 = vset.pattern.permute.xlu0 %v139
    %142 = vperm.xlu0 %141, %v137
    %v143 = vpop.permute.xlu0 %142
    %vm144 = vcmp.eq.s32.totalorder %v94, %v87
    %vm145 = vcmp.eq.s32.totalorder %v101, %v87
    %vm146 = vcmp.eq.s32.totalorder %v108, %v87
    %vm147 = vcmp.eq.s32.totalorder %v115, %v87
    %vm148 = vcmp.eq.s32.totalorder %v122, %v87
    %vm149 = vcmp.eq.s32.totalorder %v129, %v87
    %vm150 = vcmp.eq.s32.totalorder %v136, %v87
    %vm151 = vcmp.eq.s32.totalorder %v143, %v87
    %v153 = vrot.slane %v80, 1
    %v154 = vrot.slane %v80, 2
    %v155 = vrot.slane %v80, 3
    %v156 = vrot.slane %v80, 4
    %v157 = vrot.slane %v80, 5
    %v158 = vrot.slane %v80, 6
    %v159 = vrot.slane %v80, 7
    %v160 = vperm.slane %v80, 0
    %v161 = vperm.slane %v153, 0
    %v162 = vperm.slane %v154, 0
    %v163 = vperm.slane %v155, 0
    %v164 = vperm.slane %v156, 0
    %v165 = vperm.slane %v157, 0
    %v166 = vperm.slane %v158, 0
    %v167 = vperm.slane %v159, 0
    %v176 = vsel %vm144, %v160, 0.0
    %v177 = vsel %vm145, %v161, 0.0
    %v178 = vsel %vm146, %v162, 0.0
    %v179 = vsel %vm147, %v163, 0.0
    %v180 = vsel %vm148, %v164, 0.0
    %v181 = vsel %vm149, %v165, 0.0
    %v182 = vsel %vm150, %v166, 0.0
    %v183 = vsel %vm151, %v167, 0.0
    %vm184 = vcmask 60416
    %v185 = vsel %vm184, %v176, 0.0
    %186 = vadd.xlane.f32.xlu0 %v185
    %v187 = vpop.xlane.xlu0 %186
    %v188 = vsel %vm184, %v177, 0.0
    %189 = vadd.xlane.f32.xlu0 %v188
    %v190 = vpop.xlane.xlu0 %189
    %v191 = vsel %vm184, %v178, 0.0
    %192 = vadd.xlane.f32.xlu0 %v191
    %v193 = vpop.xlane.xlu0 %192
    %v194 = vsel %vm184, %v179, 0.0
    %195 = vadd.xlane.f32.xlu0 %v194
    %v196 = vpop.xlane.xlu0 %195
    %v197 = vsel %vm184, %v180, 0.0
    %198 = vadd.xlane.f32.xlu0 %v197
    %v199 = vpop.xlane.xlu0 %198
    %v200 = vsel %vm184, %v181, 0.0
    %201 = vadd.xlane.f32.xlu0 %v200
    %v202 = vpop.xlane.xlu0 %201
    %v203 = vsel %vm184, %v182, 0.0
    %204 = vadd.xlane.f32.xlu0 %v203
    %v205 = vpop.xlane.xlu0 %204
    %v206 = vsel %vm184, %v183, 0.0
    %207 = vadd.xlane.f32.xlu0 %v206
    %v208 = vpop.xlane.xlu0 %207
    %v209 = vmul.f32 %v54, 14.285714
    %v210 = vmul.f32 %v187, 14.285714
    %v211 = vmul.f32 %v190, 14.285714
    %v212 = vmul.f32 %v193, 14.285714
    %v213 = vmul.f32 %v196, 14.285714
    %v214 = vmul.f32 %v199, 14.285714
    %v215 = vmul.f32 %v202, 14.285714
    %v216 = vmul.f32 %v205, 14.285714
    %v217 = vmul.f32 %v208, 14.285714
    %v226 = vperm.slane %v210, %v87
    %v227 = vperm.slane %v211, %v87
    %v228 = vperm.slane %v212, %v87
    %v229 = vperm.slane %v213, %v87
    %v230 = vperm.slane %v214, %v87
    %v231 = vperm.slane %v215, %v87
    %v232 = vperm.slane %v216, %v87
    %v233 = vperm.slane %v217, %v87
    %vm234 = vcmask 1041409
    %v235 = vsel %vm234, %v227, %v226
    %vm236 = vcmask 1042434
    %v237 = vsel %vm236, %v228, %v235
    %vm238 = vcmask 1043459
    %v239 = vsel %vm238, %v229, %v237
    %vm240 = vcmask 1044484
    %v241 = vsel %vm240, %v230, %v239
    %vm242 = vcmask 1045509
    %v243 = vsel %vm242, %v231, %v241
    %vm244 = vcmask 1046534
    %v245 = vsel %vm244, %v232, %v243
    %vm246 = vcmask 1047559
    %v247 = vsel %vm246, %v233, %v245
    %vm249 = vcmask 31744
    %v250 = vsel %vm249, %v247, -inf
    %251 = vmax.xlane.f32.xlu0 %v250
    %v252 = vpop.xlane.xlu0 %251
    %v253 = vmax.f32 %v209, %v252
    %v254 = vsub.f32 %v209, %v253
    %v255 = vmul.f32 %v254, 1.442695
    %v256 = vpow.pop %v255
    %v258 = vperm.slane %v253, 0
    %v259 = vperm.slane %v253, 1
    %v260 = vperm.slane %v253, 2
    %v261 = vperm.slane %v253, 3
    %v262 = vperm.slane %v253, 4
    %v263 = vperm.slane %v253, 5
    %v264 = vperm.slane %v253, 6
    %v265 = vperm.slane %v253, 7
    %v274 = vsub.f32 %v210, %v258
    %v275 = vsub.f32 %v211, %v259
    %v276 = vsub.f32 %v212, %v260
    %v277 = vsub.f32 %v213, %v261
    %v278 = vsub.f32 %v214, %v262
    %v279 = vsub.f32 %v215, %v263
    %v280 = vsub.f32 %v216, %v264
    %v281 = vsub.f32 %v217, %v265
    %v282 = vmul.f32 %v274, 1.442695
    %v283 = vpow.pop %v282
    %v284 = vmul.f32 %v275, 1.442695
    %v285 = vpow.pop %v284
    %v286 = vmul.f32 %v276, 1.442695
    %v287 = vpow.pop %v286
    %v288 = vmul.f32 %v277, 1.442695
    %v289 = vpow.pop %v288
    %v290 = vmul.f32 %v278, 1.442695
    %v291 = vpow.pop %v290
    %v292 = vmul.f32 %v279, 1.442695
    %v293 = vpow.pop %v292
    %v294 = vmul.f32 %v280, 1.442695
    %v295 = vpow.pop %v294
    %v296 = vmul.f32 %v281, 1.442695
    %v297 = vpow.pop %v296
    %306 = vset.pattern.permute.xlu0 0
    %307 = vperm.xlu0 %306, %v283
    %v308 = vpop.permute.xlu0 %307
    %309 = vset.pattern.permute.xlu0 0
    %310 = vperm.xlu0 %309, %v285
    %v311 = vpop.permute.xlu0 %310
    %312 = vset.pattern.permute.xlu0 0
    %313 = vperm.xlu0 %312, %v287
    %v314 = vpop.permute.xlu0 %313
    %315 = vset.pattern.permute.xlu0 0
    %316 = vperm.xlu0 %315, %v289
    %v317 = vpop.permute.xlu0 %316
    %318 = vset.pattern.permute.xlu0 0
    %319 = vperm.xlu0 %318, %v291
    %v320 = vpop.permute.xlu0 %319
    %321 = vset.pattern.permute.xlu0 0
    %322 = vperm.xlu0 %321, %v293
    %v323 = vpop.permute.xlu0 %322
    %324 = vset.pattern.permute.xlu0 0
    %325 = vperm.xlu0 %324, %v295
    %v326 = vpop.permute.xlu0 %325
    %327 = vset.pattern.permute.xlu0 0
    %328 = vperm.xlu0 %327, %v297
    %v329 = vpop.permute.xlu0 %328
    %v330 = vperm.slane %v308, %v87
    %v331 = vperm.slane %v311, %v87
    %v332 = vperm.slane %v314, %v87
    %v333 = vperm.slane %v317, %v87
    %v334 = vperm.slane %v320, %v87
    %v335 = vperm.slane %v323, %v87
    %v336 = vperm.slane %v326, %v87
    %v337 = vperm.slane %v329, %v87
    %v338 = vsel %vm234, %v331, %v330
    %v339 = vsel %vm236, %v332, %v338
    %v340 = vsel %vm238, %v333, %v339
    %v341 = vsel %vm240, %v334, %v340
    %v342 = vsel %vm242, %v335, %v341
    %v343 = vsel %vm244, %v336, %v342
    %v344 = vsel %vm246, %v337, %v343
    %v346 = vsel %vm249, %v344, 0.0
    %347 = vadd.xlane.f32.xlu0 %v346
    %v348 = vpop.xlane.xlu0 %347
    %v349 = vadd.f32 %v256, %v348
    %v350 = vlog2.pop %v349
    %v351 = vmul.f32 %v350, 0.6931472
    %v352 = vadd.f32 %v253, %v351
    %v353 = vsub.f32 %v352, %v209
    %v355 = vperm.slane %v353, %v87
    %vm357 = vcmask 57344
    %358 = vst.msk [vmem:[#allocation5] sm:$0x1] %vm357, %v355
    // Predicated region
    $region18: #{tpu_custom_call.1} parent=1 // pred_check
      _
    $region19: #{tpu_custom_call.1} parent=1 // pred_check_branch
      %360 = sbr.rel (0) target = $region21
    $region20: #{tpu_custom_call.1} parent=1 // pred_region
      %362 = vsyncadd [#allocation4], 0
      %s364 = sshll.u32 [#allocation5], 4
      %s365 = int_to_ptr.vmem [resolvable:$true] %s364
      %s366 = sshll.u32 %s3, 4
      %s367 = int_to_ptr.hbm [resolvable:$true] %s366
      %369 = dma.vmem_to_hbm [thread:$0]  %s365, 16, %s367, [#allocation4]
    $region21: #{tpu_custom_call.1} parent=1 // pred_fallthru
      _
    // Predicated region
    $region22: #{tpu_custom_call.1} parent=1 // pred_check
      _
    $region23: #{tpu_custom_call.1} parent=1 // pred_check_branch
      %371 = sbr.rel (0) target = $region25
    $region24: #{tpu_custom_call.1} parent=1 // pred_region
      %373 = dma.done [#allocation4], 16
    $region25: #{tpu_custom_call.1} parent=1 // pred_fallthru
      _
    %374 = vsyncpa [#allocation3], 1
    %375 = vsyncpa [#allocation4], 1

</llo_original>
